<compile_context>
chip_gen: v7x
topology: tpu7x:2x2x1
jax: 0.10.0
libtpu: 0.0.40
codegen_flags: <defaults>
</compile_context>

<pallas_src>
import jax
import jax.numpy as jnp
from jax import lax
from jax.experimental import pallas as pl
from jax.experimental.pallas import tpu as pltpu

PAD_IDX = 0


def _round_up(x, m):
    return ((x + m - 1) // m) * m


# ----------------------------------------------------------------------------
# Fused kernel: embedding gather (one-hot matmul) + 2-layer MLP
# ----------------------------------------------------------------------------
def _encoder_mlp_kernel(ids_ref, emb_ref, w1_ref, b1_ref, w2_ref, b2_ref, o_ref):
    ids = ids_ref[...]                                        # (tile, 1) int32
    tile = ids.shape[0]
    vocab = emb_ref.shape[0]

    # Embedding gather fused as a one-hot matmul on the MXU (exact row select).
    onehot = (ids == lax.broadcasted_iota(jnp.int32, (tile, vocab), 1))
    x = jnp.dot(onehot.astype(jnp.bfloat16), emb_ref[...],
                preferred_element_type=jnp.float32)           # (tile, D) f32

    # 2-layer MLP: bf16 MXU inputs, f32 accumulation, elementwise math in f32
    # (v5e VPU/EUP have no bf16 path).
    h = jnp.dot(x.astype(jnp.bfloat16), w1_ref[...],
                preferred_element_type=jnp.float32) + b1_ref[...]
    h = jnp.maximum(h, 0.0)
    out = jnp.dot(h.astype(jnp.bfloat16), w2_ref[...],
                  preferred_element_type=jnp.float32) + b2_ref[...]
    o_ref[...] = out.astype(o_ref.dtype)


def encoder_hidden_pallas(ids_flat, emb_bf16, w1_bf16, b1, w2_bf16, b2,
                          *, tile_rows=256):
    """Rows = flattened (B*T) tokens. Returns [n, H] f32 hidden states."""
    n = ids_flat.shape[0]
    vocab, d = emb_bf16.shape
    h_mid = w1_bf16.shape[1]
    h_out = w2_bf16.shape[1]
    # Lane-dense output and MXU-friendly contraction/output dims.
    assert vocab % 128 == 0 and d % 128 == 0 and h_mid % 128 == 0 and h_out % 128 == 0

    # Big row tiles (clamped for tiny inputs), rows padded to a tile multiple.
    row_tile = _round_up(min(tile_rows, _round_up(n, 8)), 8)
    n_pad = _round_up(n, row_tile)
    ids_p = jnp.pad(ids_flat.astype(jnp.int32), (0, n_pad - n),
                    constant_values=PAD_IDX).reshape(n_pad, 1)
    grid = (n_pad // row_tile,)

    flops = 2 * n_pad * (vocab * d + d * h_mid + h_mid * h_out)
    bytes_accessed = (n_pad * 4                      # ids
                      + vocab * d * 2                # embedding table (bf16)
                      + d * h_mid * 2 + h_mid * 4    # w1 (bf16) + b1 (f32)
                      + h_mid * h_out * 2 + h_out * 4
                      + n_pad * h_out * 4)           # output (f32)

    # TODO(synk): for very large hidden dims (weights > ~VMEM/2 on v7x's 64 MiB),
    # add a K-tiling 'arbitrary' grid axis with an f32 accumulator in scratch.
    out = pl.pallas_call(
        _encoder_mlp_kernel,
        out_shape=jax.ShapeDtypeStruct((n_pad, h_out), jnp.float32),
        grid_spec=pltpu.PrefetchScalarGridSpec(
            num_scalar_prefetch=0,
            grid=grid,
            in_specs=[
                pl.BlockSpec((row_tile, 1), lambda i: (i, 0)),     # token ids
                pl.BlockSpec((vocab, d), lambda i: (0, 0)),        # emb (resident)
                pl.BlockSpec((d, h_mid), lambda i: (0, 0)),        # w1 (resident)
                pl.BlockSpec((1, h_mid), lambda i: (0, 0)),        # b1
                pl.BlockSpec((h_mid, h_out), lambda i: (0, 0)),    # w2 (resident)
                pl.BlockSpec((1, h_out), lambda i: (0, 0)),        # b2
            ],
            out_specs=pl.BlockSpec((row_tile, h_out), lambda i: (i, 0)),
        ),
        compiler_params=pltpu.CompilerParams(
            dimension_semantics=("parallel",),
            vmem_limit_bytes=64 * 1024 * 1024,
        ),
        cost_estimate=pl.CostEstimate(
            flops=flops, transcendentals=0, bytes_accessed=bytes_accessed),
    )(ids_p, emb_bf16, w1_bf16, b1, w2_bf16, b2)
    return out[:n]


# ----------------------------------------------------------------------------
# Synthetic encoder (deterministic params) + outer Encoder.forward
# ----------------------------------------------------------------------------
def make_params(key, vocab=128, embed_dim=128, hidden=128, max_len=32):
    k0, k1, k2, k3, k4, k5 = jax.random.split(key, 6)
    scale = 0.02
    return {
        "embed": (scale * jax.random.normal(k0, (vocab, embed_dim))).astype(jnp.bfloat16),
        "w1": (scale * jax.random.normal(k1, (embed_dim, hidden))).astype(jnp.bfloat16),
        "b1": 0.01 * jax.random.normal(k2, (1, hidden), jnp.float32),
        "w2": (scale * jax.random.normal(k3, (hidden, hidden))).astype(jnp.bfloat16),
        "b2": 0.01 * jax.random.normal(k4, (1, hidden), jnp.float32),
        "w_len": scale * jax.random.normal(k5, (hidden, max_len), jnp.float32),
    }


def synthetic_encoder(src, params, *, tile_rows=256):
    b, t = src.shape
    src_padding_mask = (src == PAD_IDX)                       # [B, T] bool
    hidden = encoder_hidden_pallas(
        src.reshape(b * t),
        params["embed"], params["w1"], params["b1"], params["w2"], params["b2"],
        tile_rows=tile_rows,
    ).reshape(b, t, -1)                                       # [B, T, H]
    # length_token: per-batch length logits (unused downstream; plain-JAX glue)
    pooled = jnp.mean(hidden, axis=1)                         # [B, H]
    length_token = pooled @ params["w_len"]                   # [B, MAX_LEN]
    return hidden, src_padding_mask, length_token


def encoder_forward(src, params, *, tile_rows=256):
    """Equivalent of Encoder.forward(src)."""
    src_hidden, src_padding_mask, _length_token = synthetic_encoder(
        src, params, tile_rows=tile_rows)
    # Tiny reduction + argmax: plain XLA fuses this for free; a separate
    # grid=(1,) pallas_call was pure launch/DMA overhead (perf review item 7).
    tgt_length = jnp.argmax(
        (~src_padding_mask).sum(-1).astype(jnp.int32) * 2).astype(jnp.int32)
    return src_hidden, src_padding_mask, tgt_length


# ----------------------------------------------------------------------------
if __name__ == "__main__":
    B, T = 2, 16
    VOCAB, D, H = 128, 128, 128
    key = jax.random.PRNGKey(0)
    kp, ks = jax.random.split(key)
    params = make_params(kp, vocab=VOCAB, embed_dim=D, hidden=H)

    # token ids in [1, vocab), with trailing padding (id 0)
    src = jax.random.randint(ks, (B, T), 1, VOCAB, dtype=jnp.int32)
    src = src.at[0, 12:].set(PAD_IDX)   # row 0: length 12
    src = src.at[1, 9:].set(PAD_IDX)    # row 1: length 9

    # tile_rows=16 -> 2 grid steps even at this toy size (megacore-friendly on v7x)
    src_hidden, src_padding_mask, tgt_length = encoder_forward(
        src, params, tile_rows=16)
    jax.block_until_ready((src_hidden, src_padding_mask, tgt_length))

    # Reference check against plain JAX (same bf16 weights, f32 accumulation)
    x = params["embed"][src.reshape(B * T)]                   # bf16 gather
    h = jnp.dot(x, params["w1"], preferred_element_type=jnp.float32) + params["b1"]
    h = jnp.maximum(h, 0.0)
    ref = jnp.dot(h.astype(jnp.bfloat16), params["w2"],
                  preferred_element_type=jnp.float32) + params["b2"]
    ref = ref.reshape(B, T, H)
    ref_len = jnp.argmax((~(src == PAD_IDX)).sum(-1) * 2).astype(jnp.int32)

    assert src_hidden.shape == (B, T, H) and src_hidden.dtype == jnp.float32
    assert src_padding_mask.shape == (B, T) and src_padding_mask.dtype == jnp.bool_
    assert jnp.allclose(src_hidden, ref, atol=1e-4, rtol=1e-2)
    assert int(tgt_length) == int(ref_len)

    print("KERNEL_OK")
</pallas_src>

<mosaic_0001>
module attributes {stable_mosaic.version = 11 : i64} {
  func.func @_encoder_mlp_kernel(%arg0: i32, %arg1: memref<16x1xi32, #tpu.memory_space<vmem>>, %arg2: memref<128x128xbf16, #tpu.memory_space<vmem>>, %arg3: memref<128x128xbf16, #tpu.memory_space<vmem>>, %arg4: memref<1x128xf32, #tpu.memory_space<vmem>>, %arg5: memref<128x128xbf16, #tpu.memory_space<vmem>>, %arg6: memref<1x128xf32, #tpu.memory_space<vmem>>, %arg7: memref<16x128xf32, #tpu.memory_space<vmem>>) attributes {dimension_semantics = [#tpu.dimension_semantics<parallel>], iteration_bounds = array<i64: 2>, scalar_prefetch = 0 : i64, scratch_operands = 0 : i64, tpu.core_type = #tpu.core_type<tc>, window_params = [{transform_indices = @transform_0, window_bounds = array<i64: 16, 1>}, {pipeline_mode = #tpu.pipeline_mode<synchronous>, transform_indices = @transform_1, window_bounds = array<i64: 128, 128>}, {pipeline_mode = #tpu.pipeline_mode<synchronous>, transform_indices = @transform_2, window_bounds = array<i64: 128, 128>}, {pipeline_mode = #tpu.pipeline_mode<synchronous>, transform_indices = @transform_3, window_bounds = array<i64: 1, 128>}, {pipeline_mode = #tpu.pipeline_mode<synchronous>, transform_indices = @transform_4, window_bounds = array<i64: 128, 128>}, {pipeline_mode = #tpu.pipeline_mode<synchronous>, transform_indices = @transform_5, window_bounds = array<i64: 1, 128>}, {transform_indices = @transform_6, window_bounds = array<i64: 16, 128>}]} {
    %c0 = arith.constant 0 : index
    %c0_0 = arith.constant 0 : index
    %0 = vector.load %arg1[%c0, %c0_0] : memref<16x1xi32, #tpu.memory_space<vmem>>, vector<16x1xi32>
    %1 = tpu.iota {dimensions = array<i32: 1>} : vector<16x128xi32>
    %2 = vector.broadcast %0 : vector<16x1xi32> to vector<16x128xi32>
    %3 = arith.cmpi eq, %2, %1 : vector<16x128xi32>
    %4 = arith.extui %3 : vector<16x128xi1> to vector<16x128xi32>
    %5 = arith.sitofp %4 : vector<16x128xi32> to vector<16x128xf32>
    %6 = arith.truncf %5 : vector<16x128xf32> to vector<16x128xbf16>
    %c0_1 = arith.constant 0 : index
    %c0_2 = arith.constant 0 : index
    %7 = vector.load %arg2[%c0_1, %c0_2] : memref<128x128xbf16, #tpu.memory_space<vmem>>, vector<128x128xbf16>
    %cst = arith.constant dense<0.000000e+00> : vector<16x128xf32>
    %8 = tpu.matmul %6, %7, %cst {dimension_numbers = #tpu.dot_dimension_numbers<[1], [0], [0], [1], [0, 0, 1, 1], [], []>} : vector<16x128xbf16>, vector<128x128xbf16>, vector<16x128xf32> -> vector<16x128xf32>
    %9 = arith.truncf %8 : vector<16x128xf32> to vector<16x128xbf16>
    %c0_3 = arith.constant 0 : index
    %c0_4 = arith.constant 0 : index
    %10 = vector.load %arg3[%c0_3, %c0_4] : memref<128x128xbf16, #tpu.memory_space<vmem>>, vector<128x128xbf16>
    %cst_5 = arith.constant dense<0.000000e+00> : vector<16x128xf32>
    %11 = tpu.matmul %9, %10, %cst_5 {dimension_numbers = #tpu.dot_dimension_numbers<[1], [0], [0], [1], [0, 0, 1, 1], [], []>} : vector<16x128xbf16>, vector<128x128xbf16>, vector<16x128xf32> -> vector<16x128xf32>
    %c0_6 = arith.constant 0 : index
    %c0_7 = arith.constant 0 : index
    %12 = vector.load %arg4[%c0_6, %c0_7] : memref<1x128xf32, #tpu.memory_space<vmem>>, vector<1x128xf32>
    %13 = vector.broadcast %12 : vector<1x128xf32> to vector<16x128xf32>
    %14 = arith.addf %11, %13 : vector<16x128xf32>
    %cst_8 = arith.constant 0.000000e+00 : f32
    %15 = vector.broadcast %cst_8 : f32 to vector<16x128xf32>
    %16 = arith.maximumf %14, %15 : vector<16x128xf32>
    %17 = arith.truncf %16 : vector<16x128xf32> to vector<16x128xbf16>
    %c0_9 = arith.constant 0 : index
    %c0_10 = arith.constant 0 : index
    %18 = vector.load %arg5[%c0_9, %c0_10] : memref<128x128xbf16, #tpu.memory_space<vmem>>, vector<128x128xbf16>
    %cst_11 = arith.constant dense<0.000000e+00> : vector<16x128xf32>
    %19 = tpu.matmul %17, %18, %cst_11 {dimension_numbers = #tpu.dot_dimension_numbers<[1], [0], [0], [1], [0, 0, 1, 1], [], []>} : vector<16x128xbf16>, vector<128x128xbf16>, vector<16x128xf32> -> vector<16x128xf32>
    %c0_12 = arith.constant 0 : index
    %c0_13 = arith.constant 0 : index
    %20 = vector.load %arg6[%c0_12, %c0_13] : memref<1x128xf32, #tpu.memory_space<vmem>>, vector<1x128xf32>
    %21 = vector.broadcast %20 : vector<1x128xf32> to vector<16x128xf32>
    %22 = arith.addf %19, %21 : vector<16x128xf32>
    %c0_14 = arith.constant 0 : index
    %c0_15 = arith.constant 0 : index
    %23 = vector.load %arg7[%c0_14, %c0_15] : memref<16x128xf32, #tpu.memory_space<vmem>>, vector<16x128xf32>
    tpu.vector_store %arg7[%c0_14, %c0_15], %22 {strides = array<i32>} : memref<16x128xf32, #tpu.memory_space<vmem>>, vector<16x128xf32>,
    return
  }
  func.func @transform_0(%arg0: i32) -> (i32, i32) {
    %c0_i32 = arith.constant 0 : i32
    %c0_i32_0 = arith.constant 0 : i32
    return %arg0, %c0_i32 : i32, i32
  }
  func.func @transform_1(%arg0: i32) -> (i32, i32) {
    %c0_i32 = arith.constant 0 : i32
    %c0_i32_0 = arith.constant 0 : i32
    %c0_i32_1 = arith.constant 0 : i32
    return %c0_i32, %c0_i32_0 : i32, i32
  }
  func.func @transform_2(%arg0: i32) -> (i32, i32) {
    %c0_i32 = arith.constant 0 : i32
    %c0_i32_0 = arith.constant 0 : i32
    %c0_i32_1 = arith.constant 0 : i32
    return %c0_i32, %c0_i32_0 : i32, i32
  }
  func.func @transform_3(%arg0: i32) -> (i32, i32) {
    %c0_i32 = arith.constant 0 : i32
    %c0_i32_0 = arith.constant 0 : i32
    %c0_i32_1 = arith.constant 0 : i32
    return %c0_i32, %c0_i32_0 : i32, i32
  }
  func.func @transform_4(%arg0: i32) -> (i32, i32) {
    %c0_i32 = arith.constant 0 : i32
    %c0_i32_0 = arith.constant 0 : i32
    %c0_i32_1 = arith.constant 0 : i32
    return %c0_i32, %c0_i32_0 : i32, i32
  }
  func.func @transform_5(%arg0: i32) -> (i32, i32) {
    %c0_i32 = arith.constant 0 : i32
    %c0_i32_0 = arith.constant 0 : i32
    %c0_i32_1 = arith.constant 0 : i32
    return %c0_i32, %c0_i32_0 : i32, i32
  }
  func.func @transform_6(%arg0: i32) -> (i32, i32) {
    %c0_i32 = arith.constant 0 : i32
    %c0_i32_0 = arith.constant 0 : i32
    return %arg0, %c0_i32 : i32, i32
  }
}

</mosaic_0001>

<llo_original>
// kernel: tpu_custom_call.1
$region0: #{tpu_custom_call.1}
  #allocation0 [shape = 'u32[]', space=smem, size = 0x4, offset = 0x4, fixed_abs, tag = 'smem constant byte address 0x4 - core index']
  #allocation1 [shape = 'u32[144,128]{1,0:T(1,128)}', space=vmem, size = 0x12000, scoped, tag = 'internal scratch']
  %s0 = inlined_call_operand.hbm [shape: s32[32,1], index: 0, kind: input, shape index: {}]
  %s1 = inlined_call_operand.hbm [shape: bf16[128,128], index: 1, kind: input, shape index: {}]
  %s2 = inlined_call_operand.hbm [shape: bf16[128,128], index: 2, kind: input, shape index: {}]
  %s3 = inlined_call_operand.hbm [shape: f32[1,128], index: 3, kind: input, shape index: {}]
  %s4 = inlined_call_operand.hbm [shape: bf16[128,128], index: 4, kind: input, shape index: {}]
  %s5 = inlined_call_operand.hbm [shape: f32[1,128], index: 5, kind: input, shape index: {}]
  %s6 = inlined_call_operand.hbm [shape: f32[32,128], index: 6, kind: output, shape index: {}]
  %s7 = sld [smem:[#allocation0]]
  $region81: #{tpu_custom_call.1} parent=0
    _
  %s9 = ssub.s32 1, %s7
  %s10 = scalar_select 0, %s9, %s7
  $region1: #{tpu_custom_call.1} parent=0
    #allocation2 [shape = 'u8[16384]{0}', space=vmem, size = 0x4000, scoped, tag = 'input window, operand 0']
    #allocation3 [shape = 's32[2]{0}', space=sflag, size = 0x8, scoped, tag = 'scoped memory for tpu_custom_call.1']
    #allocation4 [shape = 's32[2]{0}', space=sflag, size = 0x8, scoped, tag = 'scoped memory for tpu_custom_call.1']
    #allocation5 [shape = 'u8[32768]{0}', space=vmem, size = 0x8000, scoped, tag = 'input window, operand 1, single buffered']
    #allocation6 [shape = 's32[1]{0}', space=sflag, size = 0x4, scoped, tag = 'scoped memory for tpu_custom_call.1']
    #allocation7 [shape = 'u8[32768]{0}', space=vmem, size = 0x8000, scoped, tag = 'input window, operand 2, single buffered']
    #allocation8 [shape = 'u8[512]{0}', space=vmem, size = 0x400, scoped, tag = 'input window, operand 3, single buffered']
    #allocation9 [shape = 's32[1]{0}', space=sflag, size = 0x4, scoped, tag = 'scoped memory for tpu_custom_call.1']
    #allocation10 [shape = 'u8[32768]{0}', space=vmem, size = 0x8000, scoped, tag = 'input window, operand 4, single buffered']
    #allocation11 [shape = 'u8[512]{0}', space=vmem, size = 0x400, scoped, tag = 'input window, operand 5, single buffered']
    #allocation12 [shape = 's32[1]{0}', space=sflag, size = 0x4, scoped, tag = 'scoped memory for tpu_custom_call.1']
    #allocation13 [shape = 'u8[16384]{0}', space=vmem, size = 0x4000, scoped, tag = 'output window, operand 0']
    %11 = vsyncpa [#allocation3], 0
    %s12 = scalar_lea.sflag [#allocation3], 1
    %13 = vsyncpa %s12, 0
    %14 = vsyncpa [#allocation6], 0
    %15 = vsyncpa [#allocation9], 0
    %16 = vsyncpa [#allocation12], 0
    %17 = vsyncpa [#allocation4], 0
    %s18 = scalar_lea.sflag [#allocation4], 1
    %19 = vsyncpa %s18, 0
    loop: start=0, step=1, limit=4
    $region2: #{tpu_custom_call.1} parent=1 // loop_pre_header
      _
    $region3: #{tpu_custom_call.1} parent=1 // loop_header
      %s21 = sphi 0, %s25
      %p22 = scmp.ge.s32.totalorder %s21, 4
      %s31 = sphi 0, %s33
      %s34 = sphi 0, %s31
      %s35 = sphi 0, %s34
      %s51 = sphi 0, %s35
      %s55 = sphi 0, %s55
      %s57 = sphi 0, %s55
      %s58 = sphi 0, %s57
      %s72 = sphi 0, %s58
      %s76 = sphi 0, %s76
      %s78 = sphi 0, %s76
      %s79 = sphi 0, %s78
      %s93 = sphi 0, %s79
      %s97 = sphi 0, %s97
      %s99 = sphi 0, %s97
      %s100 = sphi 0, %s99
      %s114 = sphi 0, %s100
      %s118 = sphi 0, %s118
      %s120 = sphi 0, %s118
      %s121 = sphi 0, %s120
      %s135 = sphi 0, %s121
      %s139 = sphi 0, %s139
      %s141 = sphi 0, %s139
      %s142 = sphi 0, %s141
      %s156 = sphi 0, %s142
      %s162 = sphi 0, %s164
      %s165 = sphi 0, %s162
      %s166 = sphi 0, %s165
      %s182 = sphi 0, %s166
    $region4: #{tpu_custom_call.1} parent=1 // loop_header_branch
      %24 = sbr.rel (%p22) target = $region8
    $region5: #{tpu_custom_call.1} parent=1 // loop_body
      %s26 = ssub.s32 %s21, 1
      %s27 = ssub.s32 %s21, 2
      %s28 = sadd.s32 %s21, 1
      %s29 = ssub.s32 %s21, %s28
      %p30 = scmp.eq.s32.totalorder %s29, 0
      %s32 = sadd.s32 %s31, 1
      %s33 = scalar_select %p30, %s31, %s32
      %p36 = pneg %p30
      %p37 = scmp.eq.s32.totalorder %s21, 1
      %p38 = por %p36, %p37
      %p39 = scmp.ne.s32.totalorder %s31, %s34
      %p40 = scmp.eq.s32.totalorder %s21, 0
      %p41 = por %p39, %p40
      %p42 = scmp.ne.s32.totalorder %s31, %s34
      %p43 = scmp.eq.s32.totalorder %s26, 1
      %p44 = por %p42, %p43
      %p45 = scmp.ne.s32.totalorder %s34, %s35
      %p46 = scmp.eq.s32.totalorder %s26, 0
      %p47 = por %p45, %p46
      %p48 = scmp.ne.s32.totalorder %s34, %s35
      %p49 = scmp.eq.s32.totalorder %s27, 1
      %p50 = por %p48, %p49
      %p52 = scmp.ne.s32.totalorder %s35, %s51
      %p53 = scmp.eq.s32.totalorder %s27, 0
      %p54 = por %p52, %p53
      %s56 = sadd.s32 %s55, 1
      %p59 = scmp.eq.s32.totalorder %s21, 1
      %p60 = scmp.ne.s32.totalorder %s55, %s57
      %p61 = scmp.eq.s32.totalorder %s21, 0
      %p62 = por %p60, %p61
      %p63 = scmp.ne.s32.totalorder %s55, %s57
      %p64 = scmp.eq.s32.totalorder %s26, 1
      %p65 = por %p63, %p64
      %p66 = scmp.ne.s32.totalorder %s57, %s58
      %p67 = scmp.eq.s32.totalorder %s26, 0
      %p68 = por %p66, %p67
      %p69 = scmp.ne.s32.totalorder %s57, %s58
      %p70 = scmp.eq.s32.totalorder %s27, 1
      %p71 = por %p69, %p70
      %p73 = scmp.ne.s32.totalorder %s58, %s72
      %p74 = scmp.eq.s32.totalorder %s27, 0
      %p75 = por %p73, %p74
      %s77 = sadd.s32 %s76, 1
      %p80 = scmp.eq.s32.totalorder %s21, 1
      %p81 = scmp.ne.s32.totalorder %s76, %s78
      %p82 = scmp.eq.s32.totalorder %s21, 0
      %p83 = por %p81, %p82
      %p84 = scmp.ne.s32.totalorder %s76, %s78
      %p85 = scmp.eq.s32.totalorder %s26, 1
      %p86 = por %p84, %p85
      %p87 = scmp.ne.s32.totalorder %s78, %s79
      %p88 = scmp.eq.s32.totalorder %s26, 0
      %p89 = por %p87, %p88
      %p90 = scmp.ne.s32.totalorder %s78, %s79
      %p91 = scmp.eq.s32.totalorder %s27, 1
      %p92 = por %p90, %p91
      %p94 = scmp.ne.s32.totalorder %s79, %s93
      %p95 = scmp.eq.s32.totalorder %s27, 0
      %p96 = por %p94, %p95
      %s98 = sadd.s32 %s97, 1
      %p101 = scmp.eq.s32.totalorder %s21, 1
      %p102 = scmp.ne.s32.totalorder %s97, %s99
      %p103 = scmp.eq.s32.totalorder %s21, 0
      %p104 = por %p102, %p103
      %p105 = scmp.ne.s32.totalorder %s97, %s99
      %p106 = scmp.eq.s32.totalorder %s26, 1
      %p107 = por %p105, %p106
      %p108 = scmp.ne.s32.totalorder %s99, %s100
      %p109 = scmp.eq.s32.totalorder %s26, 0
      %p110 = por %p108, %p109
      %p111 = scmp.ne.s32.totalorder %s99, %s100
      %p112 = scmp.eq.s32.totalorder %s27, 1
      %p113 = por %p111, %p112
      %p115 = scmp.ne.s32.totalorder %s100, %s114
      %p116 = scmp.eq.s32.totalorder %s27, 0
      %p117 = por %p115, %p116
      %s119 = sadd.s32 %s118, 1
      %p122 = scmp.eq.s32.totalorder %s21, 1
      %p123 = scmp.ne.s32.totalorder %s118, %s120
      %p124 = scmp.eq.s32.totalorder %s21, 0
      %p125 = por %p123, %p124
      %p126 = scmp.ne.s32.totalorder %s118, %s120
      %p127 = scmp.eq.s32.totalorder %s26, 1
      %p128 = por %p126, %p127
      %p129 = scmp.ne.s32.totalorder %s120, %s121
      %p130 = scmp.eq.s32.totalorder %s26, 0
      %p131 = por %p129, %p130
      %p132 = scmp.ne.s32.totalorder %s120, %s121
      %p133 = scmp.eq.s32.totalorder %s27, 1
      %p134 = por %p132, %p133
      %p136 = scmp.ne.s32.totalorder %s121, %s135
      %p137 = scmp.eq.s32.totalorder %s27, 0
      %p138 = por %p136, %p137
      %s140 = sadd.s32 %s139, 1
      %p143 = scmp.eq.s32.totalorder %s21, 1
      %p144 = scmp.ne.s32.totalorder %s139, %s141
      %p145 = scmp.eq.s32.totalorder %s21, 0
      %p146 = por %p144, %p145
      %p147 = scmp.ne.s32.totalorder %s139, %s141
      %p148 = scmp.eq.s32.totalorder %s26, 1
      %p149 = por %p147, %p148
      %p150 = scmp.ne.s32.totalorder %s141, %s142
      %p151 = scmp.eq.s32.totalorder %s26, 0
      %p152 = por %p150, %p151
      %p153 = scmp.ne.s32.totalorder %s141, %s142
      %p154 = scmp.eq.s32.totalorder %s27, 1
      %p155 = por %p153, %p154
      %p157 = scmp.ne.s32.totalorder %s142, %s156
      %p158 = scmp.eq.s32.totalorder %s27, 0
      %p159 = por %p157, %p158
      %s160 = ssub.s32 %s21, %s28
      %p161 = scmp.eq.s32.totalorder %s160, 0
      %s163 = sadd.s32 %s162, 1
      %s164 = scalar_select %p161, %s162, %s163
      %p167 = pneg %p161
      %p168 = scmp.eq.s32.totalorder %s21, 1
      %p169 = por %p167, %p168
      %p170 = scmp.ne.s32.totalorder %s162, %s165
      %p171 = scmp.eq.s32.totalorder %s21, 0
      %p172 = por %p170, %p171
      %p173 = scmp.ne.s32.totalorder %s162, %s165
      %p174 = scmp.eq.s32.totalorder %s26, 1
      %p175 = por %p173, %p174
      %p176 = scmp.ne.s32.totalorder %s165, %s166
      %p177 = scmp.eq.s32.totalorder %s26, 0
      %p178 = por %p176, %p177
      %p179 = scmp.ne.s32.totalorder %s165, %s166
      %p180 = scmp.eq.s32.totalorder %s27, 1
      %p181 = por %p179, %p180
      %p183 = scmp.ne.s32.totalorder %s166, %s182
      %p184 = scmp.eq.s32.totalorder %s27, 0
      %p185 = por %p183, %p184
      %p186 = scmp.le.s32.totalorder 1, %s21
      %p187 = scmp.lt.s32.totalorder %s21, 3
      %p188 = pnand %p186, %p187
      %p189 = pneg %p188
      // Predicated region
      $region9: #{tpu_custom_call.1} parent=5 // pred_check
        _
      $region10: #{tpu_custom_call.1} parent=5 // pred_check_branch
        %191 = sbr.rel (%p188) target = $region12
      $region11: #{tpu_custom_call.1} parent=5 // pred_region
        %s192 = ssub.s32 %s21, 1
        // Predicated region
        $region13: #{tpu_custom_call.1} parent=11 // pred_check
          %p193 = pneg %p68
        $region14: #{tpu_custom_call.1} parent=11 // pred_check_branch
          %195 = sbr.rel (%p193) target = $region16
        $region15: #{tpu_custom_call.1} parent=11 // pred_region
          %s197 = ssub.s32 1024, 1024
          %198 = vsyncadd [#allocation6], %s197
          %s199 = sshll.u32 [#allocation5], 4
          %s200 = int_to_ptr.vmem [resolvable:$true] %s199
          %205 = dma.hbm_to_vmem [thread:$0]  %s1, 1024, %s200, [#allocation6], 64, 64, 4
        $region16: #{tpu_custom_call.1} parent=11 // pred_fallthru
          _
        // Predicated region
        $region17: #{tpu_custom_call.1} parent=11 // pred_check
          %p206 = pneg %p89
        $region18: #{tpu_custom_call.1} parent=11 // pred_check_branch
          %208 = sbr.rel (%p206) target = $region20
        $region19: #{tpu_custom_call.1} parent=11 // pred_region
          %s210 = ssub.s32 1024, 1024
          %211 = vsyncadd [#allocation6], %s210
          %s212 = sshll.u32 [#allocation7], 4
          %s213 = int_to_ptr.vmem [resolvable:$true] %s212
          %218 = dma.hbm_to_vmem [thread:$0]  %s2, 1024, %s213, [#allocation6], 64, 64, 4
        $region20: #{tpu_custom_call.1} parent=11 // pred_fallthru
          _
        // Predicated region
        $region21: #{tpu_custom_call.1} parent=11 // pred_check
          %p219 = pneg %p110
        $region22: #{tpu_custom_call.1} parent=11 // pred_check_branch
          %221 = sbr.rel (%p219) target = $region24
        $region23: #{tpu_custom_call.1} parent=11 // pred_region
          %s223 = ssub.s32 16, 16
          %224 = vsyncadd [#allocation9], %s223
          %s226 = sshll.u32 [#allocation8], 4
          %s227 = int_to_ptr.vmem [resolvable:$true] %s226
          %229 = dma.hbm_to_vmem [thread:$0]  %s3, 16, %s227, [#allocation9]
        $region24: #{tpu_custom_call.1} parent=11 // pred_fallthru
          _
        // Predicated region
        $region25: #{tpu_custom_call.1} parent=11 // pred_check
          %p230 = pneg %p131
        $region26: #{tpu_custom_call.1} parent=11 // pred_check_branch
          %232 = sbr.rel (%p230) target = $region28
        $region27: #{tpu_custom_call.1} parent=11 // pred_region
          %s234 = ssub.s32 1024, 1024
          %235 = vsyncadd [#allocation9], %s234
          %s236 = sshll.u32 [#allocation10], 4
          %s237 = int_to_ptr.vmem [resolvable:$true] %s236
          %242 = dma.hbm_to_vmem [thread:$0]  %s4, 1024, %s237, [#allocation9], 64, 64, 4
        $region28: #{tpu_custom_call.1} parent=11 // pred_fallthru
          _
        // Predicated region
        $region29: #{tpu_custom_call.1} parent=11 // pred_check
          %p243 = pneg %p152
        $region30: #{tpu_custom_call.1} parent=11 // pred_check_branch
          %245 = sbr.rel (%p243) target = $region32
        $region31: #{tpu_custom_call.1} parent=11 // pred_region
          %s247 = ssub.s32 16, 16
          %248 = vsyncadd [#allocation12], %s247
          %s250 = sshll.u32 [#allocation11], 4
          %s251 = int_to_ptr.vmem [resolvable:$true] %s250
          %253 = dma.hbm_to_vmem [thread:$0]  %s5, 16, %s251, [#allocation12]
        $region32: #{tpu_custom_call.1} parent=11 // pred_fallthru
          _
      $region12: #{tpu_custom_call.1} parent=5 // pred_fallthru
        _
      %p254 = scmp.lt.s32.totalorder %s21, 2
      // Predicated region
      $region33: #{tpu_custom_call.1} parent=5 // pred_check
        %p255 = pneg %p254
      $region34: #{tpu_custom_call.1} parent=5 // pred_check_branch
        %257 = sbr.rel (%p255) target = $region36
      $region35: #{tpu_custom_call.1} parent=5 // pred_region
        // Predicated region
        $region37: #{tpu_custom_call.1} parent=35 // pred_check
          %p258 = pneg %p41
        $region38: #{tpu_custom_call.1} parent=35 // pred_check_branch
          %260 = sbr.rel (%p258) target = $region40
        $region39: #{tpu_custom_call.1} parent=35 // pred_region
          %s261 = sand.u32 %s31, 1
          %s262 = scalar_lea.sflag [#allocation3], %s261
          %s263 = sand.u32 %s31, 1
          %s264 = smul.addr %s263, 16
          %s265 = scalar_lea.vmem [#allocation2], %s264
          %s266 = smul.u32 2, %s21
          %s268 = ssub.s32 256, 256
          %269 = vsyncadd %s262, %s268
          %s270 = smul.addr %s266, 128
          %s271 = scalar_lea.hbm %s0, %s270
          %s272 = sshll.u32 %s265, 4
          %s273 = int_to_ptr.vmem [resolvable:$true] %s272
          %278 = dma.hbm_to_vmem [thread:$0]  %s271, 256, %s273, %s262, 128, 128, 8
        $region40: #{tpu_custom_call.1} parent=35 // pred_fallthru
          _
      $region36: #{tpu_custom_call.1} parent=5 // pred_fallthru
        _
      %p279 = scmp.le.s32.totalorder 1, %s21
      %p280 = scmp.lt.s32.totalorder %s21, 3
      %p281 = pnand %p279, %p280
      %p282 = pneg %p281
      // Predicated region
      $region41: #{tpu_custom_call.1} parent=5 // pred_check
        _
      $region42: #{tpu_custom_call.1} parent=5 // pred_check_branch
        %284 = sbr.rel (%p281) target = $region44
      $region43: #{tpu_custom_call.1} parent=5 // pred_region
        %s285 = ssub.s32 %s21, 1
        %s286 = sand.u32 %s34, 1
        %s287 = scalar_lea.sflag [#allocation3], %s286
        %s288 = sand.u32 %s34, 1
        %s289 = smul.addr %s288, 16
        %s290 = scalar_lea.vmem [#allocation2], %s289
        // Predicated region
        $region45: #{tpu_custom_call.1} parent=43 // pred_check
          %p291 = pneg %p47
        $region46: #{tpu_custom_call.1} parent=43 // pred_check_branch
          %293 = sbr.rel (%p291) target = $region48
        $region47: #{tpu_custom_call.1} parent=43 // pred_region
          %294 = dma.done %s287, 256
        $region48: #{tpu_custom_call.1} parent=43 // pred_fallthru
          _
        // Predicated region
        $region49: #{tpu_custom_call.1} parent=43 // pred_check
          %p295 = pneg %p68
        $region50: #{tpu_custom_call.1} parent=43 // pred_check_branch
          %297 = sbr.rel (%p295) target = $region52
        $region51: #{tpu_custom_call.1} parent=43 // pred_region
          %298 = dma.done [#allocation6], 1024
        $region52: #{tpu_custom_call.1} parent=43 // pred_fallthru
          _
        // Predicated region
        $region53: #{tpu_custom_call.1} parent=43 // pred_check
          %p299 = pneg %p89
        $region54: #{tpu_custom_call.1} parent=43 // pred_check_branch
          %301 = sbr.rel (%p299) target = $region56
        $region55: #{tpu_custom_call.1} parent=43 // pred_region
          %302 = dma.done [#allocation6], 1024
        $region56: #{tpu_custom_call.1} parent=43 // pred_fallthru
          _
        // Predicated region
        $region57: #{tpu_custom_call.1} parent=43 // pred_check
          %p303 = pneg %p110
        $region58: #{tpu_custom_call.1} parent=43 // pred_check_branch
          %305 = sbr.rel (%p303) target = $region60
        $region59: #{tpu_custom_call.1} parent=43 // pred_region
          %306 = dma.done [#allocation9], 16
        $region60: #{tpu_custom_call.1} parent=43 // pred_fallthru
          _
        // Predicated region
        $region61: #{tpu_custom_call.1} parent=43 // pred_check
          %p307 = pneg %p131
        $region62: #{tpu_custom_call.1} parent=43 // pred_check_branch
          %309 = sbr.rel (%p307) target = $region64
        $region63: #{tpu_custom_call.1} parent=43 // pred_region
          %310 = dma.done [#allocation9], 1024
        $region64: #{tpu_custom_call.1} parent=43 // pred_fallthru
          _
        // Predicated region
        $region65: #{tpu_custom_call.1} parent=43 // pred_check
          %p311 = pneg %p152
        $region66: #{tpu_custom_call.1} parent=43 // pred_check_branch
          %313 = sbr.rel (%p311) target = $region68
        $region67: #{tpu_custom_call.1} parent=43 // pred_region
          %314 = dma.done [#allocation12], 16
        $region68: #{tpu_custom_call.1} parent=43 // pred_fallthru
          _
        %s315 = sand.u32 %s34, 1
        %s316 = scalar_lea.sflag [#allocation3], %s315
        %s317 = sand.u32 %s34, 1
        %s318 = smul.addr %s317, 16
        %s319 = scalar_lea.vmem [#allocation2], %s318
        %p320 = pneg %p47
        %p321 = pneg %p44
        %p322 = pneg %p68
        %p323 = pneg %p65
        %p324 = pneg %p89
        %p325 = pneg %p86
        %p326 = pneg %p110
        %p327 = pneg %p107
        %p328 = pneg %p131
        %p329 = pneg %p128
        %p330 = pneg %p152
        %p331 = pneg %p149
        %p332 = pneg %p178
        %p333 = pneg %p175
        %s334 = sand.u32 %s165, 1
        %s335 = scalar_lea.sflag [#allocation4], %s334
        %s336 = sand.u32 %s165, 1
        %s337 = smul.addr %s336, 16
        %s338 = scalar_lea.vmem [#allocation13], %s337
        %s339 = smul.u32 2, %s26
        %s340 = smul.u32 2, %s26
        %v342 = vld [vmem:[%s290] sm:$0xff]
        %v343 = vld [vmem:[%s290 + $0x8] sm:$0xff]
        %v344 = vlaneseq
        %v345 = vand.u32 %v344, 127
        %346 = vset.pattern.permute.xlu0 0
        %347 = vperm.xlu0 %346, %v342
        %v348 = vpop.permute.xlu0 %347
        %349 = vset.pattern.permute.xlu0 0
        %350 = vperm.xlu0 %349, %v343
        %v351 = vpop.permute.xlu0 %350
        %vm352 = vcmp.eq.s32.totalorder %v348, %v345
        %vm353 = vcmp.eq.s32.totalorder %v351, %v345
        %v354 = vsel %vm352, 1, 0
        %v355 = vsel %vm353, 1, 0
        %v356 = vcvt.s32.f32 %v354
        %v357 = vcvt.s32.f32 %v355
        %v358 = vpack.c.bf16 %v357, %v356
        %v359 = vld [vmem:[#allocation5] sm:$0xf]
        %v360 = vld [vmem:[#allocation5 + $0x4] sm:$0xf]
        %v361 = vld [vmem:[#allocation5 + $0x8] sm:$0xf]
        %v362 = vld [vmem:[#allocation5 + $0xc] sm:$0xf]
        %v363 = vld [vmem:[#allocation5 + $0x10] sm:$0xf]
        %v364 = vld [vmem:[#allocation5 + $0x14] sm:$0xf]
        %v365 = vld [vmem:[#allocation5 + $0x18] sm:$0xf]
        %v366 = vld [vmem:[#allocation5 + $0x1c] sm:$0xf]
        %v367 = vld [vmem:[#allocation5 + $0x20] sm:$0xf]
        %v368 = vld [vmem:[#allocation5 + $0x24] sm:$0xf]
        %v369 = vld [vmem:[#allocation5 + $0x28] sm:$0xf]
        %v370 = vld [vmem:[#allocation5 + $0x2c] sm:$0xf]
        %v371 = vld [vmem:[#allocation5 + $0x30] sm:$0xf]
        %v372 = vld [vmem:[#allocation5 + $0x34] sm:$0xf]
        %v373 = vld [vmem:[#allocation5 + $0x38] sm:$0xf]
        %v374 = vld [vmem:[#allocation5 + $0x3c] sm:$0xf]
        %v391 = vunpack.c.l.b16 %v359
        %v392 = vunpack.c.l.b16 %v360
        %v393 = vunpack.c.l.b16 %v361
        %v394 = vunpack.c.l.b16 %v362
        %v395 = vunpack.c.l.b16 %v363
        %v396 = vunpack.c.l.b16 %v364
        %v397 = vunpack.c.l.b16 %v365
        %v398 = vunpack.c.l.b16 %v366
        %v399 = vunpack.c.l.b16 %v367
        %v400 = vunpack.c.l.b16 %v368
        %v401 = vunpack.c.l.b16 %v369
        %v402 = vunpack.c.l.b16 %v370
        %v403 = vunpack.c.l.b16 %v371
        %v404 = vunpack.c.l.b16 %v372
        %v405 = vunpack.c.l.b16 %v373
        %v406 = vunpack.c.l.b16 %v374
        %v407 = vpack.c.b16 %v392, %v391
        %v408 = vpack.c.b16 %v394, %v393
        %v409 = vpack.c.b16 %v396, %v395
        %v410 = vpack.c.b16 %v398, %v397
        %v411 = vpack.c.b16 %v400, %v399
        %v412 = vpack.c.b16 %v402, %v401
        %v413 = vpack.c.b16 %v404, %v403
        %v414 = vpack.c.b16 %v406, %v405
        %423 = vmatprep.subr.bf16.mxu0 0
        %424 = vmatpush1.bf16.msra.mxu0 %v407
        %425 = vmatprep.subr.bf16.mxu0 0
        %426 = vmatpush1.bf16.msra.mxu0 %v408
        %427 = vmatprep.subr.bf16.mxu0 0
        %428 = vmatpush1.bf16.msra.mxu0 %v409
        %429 = vmatprep.subr.bf16.mxu0 0
        %430 = vmatpush1.bf16.msra.mxu0 %v410
        %431 = vmatprep.subr.bf16.mxu0 0
        %432 = vmatpush1.bf16.msra.mxu0 %v411
        %433 = vmatprep.subr.bf16.mxu0 0
        %434 = vmatpush1.bf16.msra.mxu0 %v412
        %435 = vmatprep.subr.bf16.mxu0 0
        %436 = vmatpush1.bf16.msra.mxu0 %v413
        %437 = vmatprep.subr.bf16.mxu0 0
        %438 = vmatpush1.bf16.msra.mxu0 %v414
        %439 = vmatprep.subr.bf16.mxu0 0
        %440 = vmatpush1.bf16.msra.mxu0 0
        %441 = vmatprep.subr.bf16.mxu0 0
        %442 = vmatpush1.bf16.msra.mxu0 0
        %443 = vmatprep.subr.bf16.mxu0 0
        %444 = vmatpush1.bf16.msra.mxu0 0
        %445 = vmatprep.subr.bf16.mxu0 0
        %446 = vmatpush1.bf16.msra.mxu0 0
        %447 = vmatprep.subr.bf16.mxu0 0
        %448 = vmatpush1.bf16.msra.mxu0 0
        %449 = vmatprep.subr.bf16.mxu0 0
        %450 = vmatpush1.bf16.msra.mxu0 0
        %451 = vmatprep.subr.bf16.mxu0 0
        %452 = vmatpush1.bf16.msra.mxu0 0
        %453 = vmatprep.subr.bf16.mxu0 0
        %454 = vmatpush1.bf16.msra.mxu0 0
        %455 = vmatprep.mubr.bf16.mxu0 0
        %456 = vmatmul.mubr.bf16.gmra.mrb[0].mxu0 %v358
        %v457 = vpop.f32.mrb[0].mxu0
        %v458 = vadd.f32 0.0, %v457
        %v459 = vpop.f32.mrb[0].mxu0
        %v460 = vpop.f32.mrb[0].mxu0
        %v461 = vadd.f32 0.0, %v460
        %v462 = vpop.f32.mrb[0].mxu0
        %463 = vdwg.mxu0
        %v464 = vpack.c.bf16 %v461, %v458
        %v465 = vld [vmem:[#allocation7] sm:$0xf]
        %v466 = vld [vmem:[#allocation7 + $0x4] sm:$0xf]
        %v467 = vld [vmem:[#allocation7 + $0x8] sm:$0xf]
        %v468 = vld [vmem:[#allocation7 + $0xc] sm:$0xf]
        %v469 = vld [vmem:[#allocation7 + $0x10] sm:$0xf]
        %v470 = vld [vmem:[#allocation7 + $0x14] sm:$0xf]
        %v471 = vld [vmem:[#allocation7 + $0x18] sm:$0xf]
        %v472 = vld [vmem:[#allocation7 + $0x1c] sm:$0xf]
        %v473 = vld [vmem:[#allocation7 + $0x20] sm:$0xf]
        %v474 = vld [vmem:[#allocation7 + $0x24] sm:$0xf]
        %v475 = vld [vmem:[#allocation7 + $0x28] sm:$0xf]
        %v476 = vld [vmem:[#allocation7 + $0x2c] sm:$0xf]
        %v477 = vld [vmem:[#allocation7 + $0x30] sm:$0xf]
        %v478 = vld [vmem:[#allocation7 + $0x34] sm:$0xf]
        %v479 = vld [vmem:[#allocation7 + $0x38] sm:$0xf]
        %v480 = vld [vmem:[#allocation7 + $0x3c] sm:$0xf]
        %v481 = vld [vmem:[#allocation8] sm:$0x1]
        %v483 = vlaneseq
        %v484 = vshrl.u32 %v483, 7
        %v485 = vsub.s32 0, %v484
        %v486 = vrot.slane %v481, %v485
        %v504 = vunpack.c.l.b16 %v465
        %v505 = vunpack.c.l.b16 %v466
        %v506 = vunpack.c.l.b16 %v467
        %v507 = vunpack.c.l.b16 %v468
        %v508 = vunpack.c.l.b16 %v469
        %v509 = vunpack.c.l.b16 %v470
        %v510 = vunpack.c.l.b16 %v471
        %v511 = vunpack.c.l.b16 %v472
        %v512 = vunpack.c.l.b16 %v473
        %v513 = vunpack.c.l.b16 %v474
        %v514 = vunpack.c.l.b16 %v475
        %v515 = vunpack.c.l.b16 %v476
        %v516 = vunpack.c.l.b16 %v477
        %v517 = vunpack.c.l.b16 %v478
        %v518 = vunpack.c.l.b16 %v479
        %v519 = vunpack.c.l.b16 %v480
        %v520 = vpack.c.b16 %v505, %v504
        %v521 = vpack.c.b16 %v507, %v506
        %v522 = vpack.c.b16 %v509, %v508
        %v523 = vpack.c.b16 %v511, %v510
        %v524 = vpack.c.b16 %v513, %v512
        %v525 = vpack.c.b16 %v515, %v514
        %v526 = vpack.c.b16 %v517, %v516
        %v527 = vpack.c.b16 %v519, %v518
        %536 = vmatprep.subr.bf16.mxu0 0
        %537 = vmatpush1.bf16.msra.mxu0 %v520
        %538 = vmatprep.subr.bf16.mxu0 0
        %539 = vmatpush1.bf16.msra.mxu0 %v521
        %540 = vmatprep.subr.bf16.mxu0 0
        %541 = vmatpush1.bf16.msra.mxu0 %v522
        %542 = vmatprep.subr.bf16.mxu0 0
        %543 = vmatpush1.bf16.msra.mxu0 %v523
        %544 = vmatprep.subr.bf16.mxu0 0
        %545 = vmatpush1.bf16.msra.mxu0 %v524
        %546 = vmatprep.subr.bf16.mxu0 0
        %547 = vmatpush1.bf16.msra.mxu0 %v525
        %548 = vmatprep.subr.bf16.mxu0 0
        %549 = vmatpush1.bf16.msra.mxu0 %v526
        %550 = vmatprep.subr.bf16.mxu0 0
        %551 = vmatpush1.bf16.msra.mxu0 %v527
        %552 = vmatprep.subr.bf16.mxu0 0
        %553 = vmatpush1.bf16.msra.mxu0 0
        %554 = vmatprep.subr.bf16.mxu0 0
        %555 = vmatpush1.bf16.msra.mxu0 0
        %556 = vmatprep.subr.bf16.mxu0 0
        %557 = vmatpush1.bf16.msra.mxu0 0
        %558 = vmatprep.subr.bf16.mxu0 0
        %559 = vmatpush1.bf16.msra.mxu0 0
        %560 = vmatprep.subr.bf16.mxu0 0
        %561 = vmatpush1.bf16.msra.mxu0 0
        %562 = vmatprep.subr.bf16.mxu0 0
        %563 = vmatpush1.bf16.msra.mxu0 0
        %564 = vmatprep.subr.bf16.mxu0 0
        %565 = vmatpush1.bf16.msra.mxu0 0
        %566 = vmatprep.subr.bf16.mxu0 0
        %567 = vmatpush1.bf16.msra.mxu0 0
        %568 = vmatprep.mubr.bf16.mxu0 0
        %569 = vmatmul.mubr.bf16.gmra.mrb[0].mxu0 %v464
        %v570 = vpop.f32.mrb[0].mxu0
        %v571 = vadd.f32 %v486, %v570
        %v572 = vpop.f32.mrb[0].mxu0
        %v573 = vpop.f32.mrb[0].mxu0
        %v574 = vadd.f32 %v486, %v573
        %v575 = vpop.f32.mrb[0].mxu0
        %576 = vdwg.mxu0
        %v577 = vmax.f32 %v571, 0.0
        %v578 = vmax.f32 %v574, 0.0
        %v579 = vpack.c.bf16 %v578, %v577
        %v580 = vld [vmem:[#allocation10] sm:$0xf]
        %v581 = vld [vmem:[#allocation10 + $0x4] sm:$0xf]
        %v582 = vld [vmem:[#allocation10 + $0x8] sm:$0xf]
        %v583 = vld [vmem:[#allocation10 + $0xc] sm:$0xf]
        %v584 = vld [vmem:[#allocation10 + $0x10] sm:$0xf]
        %v585 = vld [vmem:[#allocation10 + $0x14] sm:$0xf]
        %v586 = vld [vmem:[#allocation10 + $0x18] sm:$0xf]
        %v587 = vld [vmem:[#allocation10 + $0x1c] sm:$0xf]
        %v588 = vld [vmem:[#allocation10 + $0x20] sm:$0xf]
        %v589 = vld [vmem:[#allocation10 + $0x24] sm:$0xf]
        %v590 = vld [vmem:[#allocation10 + $0x28] sm:$0xf]
        %v591 = vld [vmem:[#allocation10 + $0x2c] sm:$0xf]
        %v592 = vld [vmem:[#allocation10 + $0x30] sm:$0xf]
        %v593 = vld [vmem:[#allocation10 + $0x34] sm:$0xf]
        %v594 = vld [vmem:[#allocation10 + $0x38] sm:$0xf]
        %v595 = vld [vmem:[#allocation10 + $0x3c] sm:$0xf]
        %v596 = vld [vmem:[#allocation11] sm:$0x1]
        %v598 = vlaneseq
        %v599 = vshrl.u32 %v598, 7
        %v600 = vsub.s32 0, %v599
        %v601 = vrot.slane %v596, %v600
        %v619 = vunpack.c.l.b16 %v580
        %v620 = vunpack.c.l.b16 %v581
        %v621 = vunpack.c.l.b16 %v582
        %v622 = vunpack.c.l.b16 %v583
        %v623 = vunpack.c.l.b16 %v584
        %v624 = vunpack.c.l.b16 %v585
        %v625 = vunpack.c.l.b16 %v586
        %v626 = vunpack.c.l.b16 %v587
        %v627 = vunpack.c.l.b16 %v588
        %v628 = vunpack.c.l.b16 %v589
        %v629 = vunpack.c.l.b16 %v590
        %v630 = vunpack.c.l.b16 %v591
        %v631 = vunpack.c.l.b16 %v592
        %v632 = vunpack.c.l.b16 %v593
        %v633 = vunpack.c.l.b16 %v594
        %v634 = vunpack.c.l.b16 %v595
        %v635 = vpack.c.b16 %v620, %v619
        %v636 = vpack.c.b16 %v622, %v621
        %v637 = vpack.c.b16 %v624, %v623
        %v638 = vpack.c.b16 %v626, %v625
        %v639 = vpack.c.b16 %v628, %v627
        %v640 = vpack.c.b16 %v630, %v629
        %v641 = vpack.c.b16 %v632, %v631
        %v642 = vpack.c.b16 %v634, %v633
        %651 = vmatprep.subr.bf16.mxu0 0
        %652 = vmatpush1.bf16.msra.mxu0 %v635
        %653 = vmatprep.subr.bf16.mxu0 0
        %654 = vmatpush1.bf16.msra.mxu0 %v636
        %655 = vmatprep.subr.bf16.mxu0 0
        %656 = vmatpush1.bf16.msra.mxu0 %v637
        %657 = vmatprep.subr.bf16.mxu0 0
        %658 = vmatpush1.bf16.msra.mxu0 %v638
        %659 = vmatprep.subr.bf16.mxu0 0
        %660 = vmatpush1.bf16.msra.mxu0 %v639
        %661 = vmatprep.subr.bf16.mxu0 0
        %662 = vmatpush1.bf16.msra.mxu0 %v640
        %663 = vmatprep.subr.bf16.mxu0 0
        %664 = vmatpush1.bf16.msra.mxu0 %v641
        %665 = vmatprep.subr.bf16.mxu0 0
        %666 = vmatpush1.bf16.msra.mxu0 %v642
        %667 = vmatprep.subr.bf16.mxu0 0
        %668 = vmatpush1.bf16.msra.mxu0 0
        %669 = vmatprep.subr.bf16.mxu0 0
        %670 = vmatpush1.bf16.msra.mxu0 0
        %671 = vmatprep.subr.bf16.mxu0 0
        %672 = vmatpush1.bf16.msra.mxu0 0
        %673 = vmatprep.subr.bf16.mxu0 0
        %674 = vmatpush1.bf16.msra.mxu0 0
        %675 = vmatprep.subr.bf16.mxu0 0
        %676 = vmatpush1.bf16.msra.mxu0 0
        %677 = vmatprep.subr.bf16.mxu0 0
        %678 = vmatpush1.bf16.msra.mxu0 0
        %679 = vmatprep.subr.bf16.mxu0 0
        %680 = vmatpush1.bf16.msra.mxu0 0
        %681 = vmatprep.subr.bf16.mxu0 0
        %682 = vmatpush1.bf16.msra.mxu0 0
        %683 = vmatprep.mubr.bf16.mxu0 0
        %684 = vmatmul.mubr.bf16.gmra.mrb[0].mxu0 %v579
        %v685 = vpop.f32.mrb[0].mxu0
        %v686 = vadd.f32 %v601, %v685
        %v687 = vpop.f32.mrb[0].mxu0
        %v688 = vpop.f32.mrb[0].mxu0
        %v689 = vadd.f32 %v601, %v688
        %v690 = vpop.f32.mrb[0].mxu0
        %691 = vdwg.mxu0
        %692 = vst [vmem:[%s338] sm:$0xff] %v686
        %693 = vst [vmem:[%s338 + $0x8] sm:$0xff] %v689
        %s694 = sand.u32 %s165, 1
        %s695 = scalar_lea.sflag [#allocation4], %s694
        %s696 = sand.u32 %s165, 1
        %s697 = smul.addr %s696, 16
        %s698 = scalar_lea.vmem [#allocation13], %s697
        // Predicated region
        $region69: #{tpu_custom_call.1} parent=43 // pred_check
          %p699 = pneg %p175
        $region70: #{tpu_custom_call.1} parent=43 // pred_check_branch
          %701 = sbr.rel (%p699) target = $region72
        $region71: #{tpu_custom_call.1} parent=43 // pred_region
          %s702 = smul.u32 2, %s26
          %s704 = ssub.s32 256, 256
          %705 = vsyncadd %s695, %s704
          %s706 = smul.addr %s702, 128
          %s707 = scalar_lea.hbm %s6, %s706
          %s708 = sshll.u32 %s698, 4
          %s709 = int_to_ptr.vmem [resolvable:$true] %s708
          %714 = dma.vmem_to_hbm [thread:$0]  %s709, 256, %s707, %s695, 128, 128, 8
        $region72: #{tpu_custom_call.1} parent=43 // pred_fallthru
          _
      $region44: #{tpu_custom_call.1} parent=5 // pred_fallthru
        _
      %p715 = scmp.le.s32.totalorder 2, %s21
      // Predicated region
      $region73: #{tpu_custom_call.1} parent=5 // pred_check
        %p716 = pneg %p715
      $region74: #{tpu_custom_call.1} parent=5 // pred_check_branch
        %718 = sbr.rel (%p716) target = $region76
      $region75: #{tpu_custom_call.1} parent=5 // pred_region
        %s719 = ssub.s32 %s21, 2
        // Predicated region
        $region77: #{tpu_custom_call.1} parent=75 // pred_check
          %p720 = pneg %p181
        $region78: #{tpu_custom_call.1} parent=75 // pred_check_branch
          %722 = sbr.rel (%p720) target = $region80
        $region79: #{tpu_custom_call.1} parent=75 // pred_region
          %s723 = sand.u32 %s166, 1
          %s724 = scalar_lea.sflag [#allocation4], %s723
          %s725 = sand.u32 %s166, 1
          %s726 = smul.addr %s725, 16
          %s727 = scalar_lea.vmem [#allocation13], %s726
          %728 = dma.done %s724, 256
        $region80: #{tpu_custom_call.1} parent=75 // pred_fallthru
          _
      $region76: #{tpu_custom_call.1} parent=5 // pred_fallthru
        _
    $region6: #{tpu_custom_call.1} parent=1 // loop_footer
      %s25 = sadd.s32 1, %s21
    $region7: #{tpu_custom_call.1} parent=1 // loop_footer_branch
      %20 = sbr.rel target = $region3
    $region8: #{tpu_custom_call.1} parent=1 // loop_exit
      _
    %729 = vsyncpa [#allocation3], 1
    %s730 = scalar_lea.sflag [#allocation3], 1
    %731 = vsyncpa %s730, 1
    %732 = vsyncpa [#allocation6], 1
    %733 = vsyncpa [#allocation9], 1
    %734 = vsyncpa [#allocation12], 1
    %735 = vsyncpa [#allocation4], 1
    %s736 = scalar_lea.sflag [#allocation4], 1
    %737 = vsyncpa %s736, 1

</llo_original>
